<compile_context>
chip_gen: v7x
topology: tpu7x:2x2x1
jax: 0.10.0
libtpu: 0.0.40
codegen_flags: <defaults>
</compile_context>

<pallas_src>
import functools

import jax
import jax.numpy as jnp
from jax.experimental import pallas as pl
from jax.experimental.pallas import tpu as pltpu

LANE = 128


def _mish_math(xf):
    """Numerically-stable Mish on f32 values: x * tanh(softplus(x))."""
    # tanh(softplus(x)) == (e^2x + 2 e^x) / (e^2x + 2 e^x + 2)  -> single exp.
    t = jnp.exp(jnp.minimum(xf, 20.0))      # clamp avoids inf*inf in the product
    n = t * (t + 2.0)
    return jnp.where(xf > 20.0, xf, xf * (n / (n + 2.0)))


def _mish_kernel(x_ref, o_ref, *, approx_recip):
    x = x_ref[...].astype(jnp.float32)
    t = jnp.exp(jnp.minimum(x, 20.0))
    n = t * (t + 2.0)
    if approx_recip:
        # v7x: keep the divide on the EUP slot so compute stays under the DMA shadow.
        frac = n * pl.reciprocal(n + 2.0, approx=True)
    else:
        frac = n / (n + 2.0)
    o_ref[...] = jnp.where(x > 20.0, x, x * frac).astype(o_ref.dtype)


def _chip_tuning():
    """Return (block_bytes, num_tensorcores, use_approx_recip) for this chip."""
    kind = ""
    try:
        kind = jax.devices()[0].device_kind.lower()
    except Exception:
        pass
    is_v7 = ("v7" in kind) or ("7x" in kind)
    is_v6 = "v6" in kind
    if is_v7 or is_v6:
        # 4 buffers (in+out, double-buffered) * 4 MiB = 16 MiB < 32 MiB scoped default.
        block_bytes = 4 * 1024 * 1024
    else:
        # v5e / unknown: 4 * 2 MiB = 8 MiB < 16 MiB scoped default.  Do not raise.
        block_bytes = 2 * 1024 * 1024
    num_tc = 2 if is_v7 else 1
    return block_bytes, num_tc, is_v7


def mish(x: jax.Array) -> jax.Array:
    """Elementwise Mish: x * tanh(softplus(x)). Works on any shape/float dtype."""
    orig_shape = x.shape
    orig_dtype = x.dtype
    total = x.size
    if total == 0:
        return x

    itemsize = jnp.dtype(orig_dtype).itemsize
    # dtype-aware minimum sublane tiling for the BLOCK: f32->8, bf16/f16->16, 8-bit->32
    sub = {4: 8, 2: 16, 1: 32}.get(itemsize, 8)

    flat = jnp.ravel(x)
    main = (total // LANE) * LANE          # 128-aligned prefix handled by the kernel
    tail = total - main                    # < 128 trailing elements handled in jnp

    if main == 0:
        # Tiny tensor (< 128 elements): not worth a kernel launch.
        return _mish_math(flat.astype(jnp.float32)).astype(orig_dtype).reshape(orig_shape)

    block_bytes, num_tc, use_approx = _chip_tuning()

    head = flat[:main] if tail else flat
    rows = main // LANE
    x2d = head.reshape(rows, LANE)

    # Largest block (in rows) that keeps in+out double-buffering inside scoped VMEM.
    tr_max = max(sub, (block_bytes // (LANE * itemsize)) // sub * sub)

    if rows > tr_max:
        tr = tr_max
    elif num_tc >= 2 and rows * LANE * itemsize >= 2 * 512 * 1024:
        # v7x only: split mid-size inputs into 2 steps so both TensorCores get work.
        half = -(-rows // 2)
        tr = max(sub, -(-half // sub) * sub)
    else:
        # Single block covering everything: no extra per-step overhead on 1-TC chips.
        tr = max(sub, -(-rows // sub) * sub)

    grid = (pl.cdiv(rows, tr),)            # partial last block is masked by Pallas

    kernel = functools.partial(_mish_kernel, approx_recip=use_approx)

    out2d = pl.pallas_call(
        kernel,
        out_shape=jax.ShapeDtypeStruct((rows, LANE), orig_dtype),
        grid_spec=pltpu.PrefetchScalarGridSpec(
            num_scalar_prefetch=0,
            grid=grid,
            in_specs=[pl.BlockSpec((tr, LANE), lambda i: (i, 0))],
            out_specs=pl.BlockSpec((tr, LANE), lambda i: (i, 0)),
        ),
        compiler_params=pltpu.CompilerParams(
            dimension_semantics=("parallel",),
        ),
        cost_estimate=pl.CostEstimate(
            flops=6 * main,
            transcendentals=main,
            bytes_accessed=2 * main * itemsize,
        ),
    )(x2d)

    out_flat = out2d.reshape(-1)
    if tail:
        tail_out = _mish_math(flat[main:].astype(jnp.float32)).astype(orig_dtype)
        out_flat = jnp.concatenate([out_flat, tail_out])
    return out_flat.reshape(orig_shape)


def _mish_ref(x):
    xf = x.astype(jnp.float32)
    return (xf * jnp.tanh(jax.nn.softplus(xf))).astype(x.dtype)


if __name__ == "__main__":
    key = jax.random.PRNGKey(0)
    x = jax.random.normal(key, (2, 4, 16, 16), dtype=jnp.float32) * 3.0

    y = mish(x)
    jax.block_until_ready(y)

    _, _, _approx = _chip_tuning()
    tol = 1e-3 if _approx else 1e-5        # approx rcp (v7x) is ~2^-12 relative

    y_ref = _mish_ref(x)
    assert y.shape == x.shape and y.dtype == x.dtype
    assert jnp.allclose(y, y_ref, atol=tol, rtol=tol)

    # Ragged / small shape: exercises the 128-aligned-prefix + jnp-tail path.
    x2 = jax.random.normal(jax.random.PRNGKey(1), (5, 7, 11), dtype=jnp.float32) * 3.0
    y2 = mish(x2)
    jax.block_until_ready(y2)
    assert y2.shape == x2.shape and y2.dtype == x2.dtype
    assert jnp.allclose(y2, _mish_ref(x2), atol=tol, rtol=tol)

    print("KERNEL_OK")
</pallas_src>

<mosaic_0001>
module attributes {stable_mosaic.version = 11 : i64} {
  func.func @_mish_kernel(%arg0: i32, %arg1: memref<16x128xf32, #tpu.memory_space<vmem>>, %arg2: memref<16x128xf32, #tpu.memory_space<vmem>>) attributes {dimension_semantics = [#tpu.dimension_semantics<parallel>], iteration_bounds = array<i64: 1>, scalar_prefetch = 0 : i64, scratch_operands = 0 : i64, tpu.core_type = #tpu.core_type<tc>, window_params = [{transform_indices = @transform_0, window_bounds = array<i64: 16, 128>}, {transform_indices = @transform_1, window_bounds = array<i64: 16, 128>}]} {
    %c0 = arith.constant 0 : index
    %c0_0 = arith.constant 0 : index
    %0 = vector.load %arg1[%c0, %c0_0] : memref<16x128xf32, #tpu.memory_space<vmem>>, vector<16x128xf32>
    %cst = arith.constant 2.000000e+01 : f32
    %1 = vector.broadcast %cst : f32 to vector<16x128xf32>
    %2 = arith.minimumf %0, %1 : vector<16x128xf32>
    %3 = math.exp %2 : vector<16x128xf32>
    %cst_1 = arith.constant 2.000000e+00 : f32
    %4 = vector.broadcast %cst_1 : f32 to vector<16x128xf32>
    %5 = arith.addf %3, %4 : vector<16x128xf32>
    %6 = arith.mulf %3, %5 : vector<16x128xf32>
    %cst_2 = arith.constant 2.000000e+00 : f32
    %7 = vector.broadcast %cst_2 : f32 to vector<16x128xf32>
    %8 = arith.addf %6, %7 : vector<16x128xf32>
    %9 = arith.divf %6, %8 : vector<16x128xf32>
    %cst_3 = arith.constant 2.000000e+01 : f32
    %10 = vector.broadcast %cst_3 : f32 to vector<16x128xf32>
    %11 = arith.cmpf ogt, %0, %10 : vector<16x128xf32>
    %12 = arith.mulf %0, %9 : vector<16x128xf32>
    %13 = arith.select %11, %0, %12 : vector<16x128xi1>, vector<16x128xf32>
    %c0_4 = arith.constant 0 : index
    %c0_5 = arith.constant 0 : index
    %14 = vector.load %arg2[%c0_4, %c0_5] : memref<16x128xf32, #tpu.memory_space<vmem>>, vector<16x128xf32>
    tpu.vector_store %arg2[%c0_4, %c0_5], %13 {strides = array<i32>} : memref<16x128xf32, #tpu.memory_space<vmem>>, vector<16x128xf32>,
    return
  }
  func.func @transform_0(%arg0: i32) -> (i32, i32) {
    %c0_i32 = arith.constant 0 : i32
    %c0_i32_0 = arith.constant 0 : i32
    return %arg0, %c0_i32 : i32, i32
  }
  func.func @transform_1(%arg0: i32) -> (i32, i32) {
    %c0_i32 = arith.constant 0 : i32
    %c0_i32_0 = arith.constant 0 : i32
    return %arg0, %c0_i32 : i32, i32
  }
}

</mosaic_0001>

<llo_original>
// kernel: tpu_custom_call.1
$region0: #{tpu_custom_call.1}
  #allocation0 [shape = 'u32[]', space=smem, size = 0x4, offset = 0x4, fixed_abs, tag = 'smem constant byte address 0x4 - core index']
  #allocation1 [shape = 'u32[144,128]{1,0:T(1,128)}', space=vmem, size = 0x12000, scoped, tag = 'internal scratch']
  %s0 = inlined_call_operand.hbm [shape: f32[16,128], index: 0, kind: input, shape index: {}]
  %s1 = inlined_call_operand.hbm [shape: f32[16,128], index: 1, kind: output, shape index: {}]
  %s2 = sld [smem:[#allocation0]]
  $region18: #{tpu_custom_call.1} parent=0
    _
  %s4 = ssub.s32 1, %s2
  %s5 = scalar_select 0, %s4, %s2
  $region1: #{tpu_custom_call.1} parent=0
    #allocation2 [shape = 'u8[8192]{0}', space=vmem, size = 0x2000, scoped, tag = 'input window, operand 0, single buffered']
    #allocation3 [shape = 's32[1]{0}', space=sflag, size = 0x4, scoped, tag = 'scoped memory for tpu_custom_call.1']
    #allocation4 [shape = 's32[1]{0}', space=sflag, size = 0x4, scoped, tag = 'scoped memory for tpu_custom_call.1']
    #allocation5 [shape = 'u8[8192]{0}', space=vmem, size = 0x2000, scoped, tag = 'output window, operand 0, single buffered']
    %6 = vsyncpa [#allocation3], 0
    %7 = vsyncpa [#allocation4], 0
    // Predicated region
    $region2: #{tpu_custom_call.1} parent=1 // pred_check
      _
    $region3: #{tpu_custom_call.1} parent=1 // pred_check_branch
      %9 = sbr.rel (0) target = $region5
    $region4: #{tpu_custom_call.1} parent=1 // pred_region
      %s11 = ssub.s32 256, 256
      %12 = vsyncadd [#allocation3], %s11
      %s13 = sshll.u32 [#allocation2], 4
      %s14 = int_to_ptr.vmem [resolvable:$true] %s13
      %19 = dma.hbm_to_vmem [thread:$0]  %s0, 256, %s14, [#allocation3], 128, 128, 8
    $region5: #{tpu_custom_call.1} parent=1 // pred_fallthru
      _
    // Predicated region
    $region6: #{tpu_custom_call.1} parent=1 // pred_check
      _
    $region7: #{tpu_custom_call.1} parent=1 // pred_check_branch
      %21 = sbr.rel (0) target = $region9
    $region8: #{tpu_custom_call.1} parent=1 // pred_region
      %22 = dma.done [#allocation3], 256
    $region9: #{tpu_custom_call.1} parent=1 // pred_fallthru
      _
    %v23 = vld [vmem:[#allocation2] sm:$0xff]
    %v24 = vld [vmem:[#allocation2 + $0x8] sm:$0xff]
    %v25 = vmin.f32 %v23, 20.0
    %v26 = vmin.f32 %v24, 20.0
    %v27 = vmul.f32 %v25, 1.442695
    %v28 = vpow.pop %v27
    %v29 = vmul.f32 %v26, 1.442695
    %v30 = vpow.pop %v29
    %v31 = vadd.f32 %v28, 2.0
    %v32 = vadd.f32 %v30, 2.0
    %v33 = vmul.f32 %v28, %v31
    %v34 = vmul.f32 %v30, %v32
    %v35 = vadd.f32 %v33, 2.0
    %v36 = vadd.f32 %v34, 2.0
    %v37 = vrcp.pop %v35
    %v38 = vmul.f32 %v33, %v37
    %v39 = vrcp.pop %v36
    %v40 = vmul.f32 %v34, %v39
    %vm41 = vcmp.gt.f32.partialorder %v23, 20.0
    %vm42 = vcmp.gt.f32.partialorder %v24, 20.0
    %v43 = vmul.f32 %v23, %v38
    %v44 = vmul.f32 %v24, %v40
    %v45 = vsel %vm41, %v23, %v43
    %v46 = vsel %vm42, %v24, %v44
    %47 = vst [vmem:[#allocation5] sm:$0xff] %v45
    %48 = vst [vmem:[#allocation5 + $0x8] sm:$0xff] %v46
    // Predicated region
    $region10: #{tpu_custom_call.1} parent=1 // pred_check
      _
    $region11: #{tpu_custom_call.1} parent=1 // pred_check_branch
      %50 = sbr.rel (0) target = $region13
    $region12: #{tpu_custom_call.1} parent=1 // pred_region
      %s52 = ssub.s32 256, 256
      %53 = vsyncadd [#allocation4], %s52
      %s54 = sshll.u32 [#allocation5], 4
      %s55 = int_to_ptr.vmem [resolvable:$true] %s54
      %60 = dma.vmem_to_hbm [thread:$0]  %s55, 256, %s1, [#allocation4], 128, 128, 8
    $region13: #{tpu_custom_call.1} parent=1 // pred_fallthru
      _
    // Predicated region
    $region14: #{tpu_custom_call.1} parent=1 // pred_check
      _
    $region15: #{tpu_custom_call.1} parent=1 // pred_check_branch
      %62 = sbr.rel (0) target = $region17
    $region16: #{tpu_custom_call.1} parent=1 // pred_region
      %63 = dma.done [#allocation4], 256
    $region17: #{tpu_custom_call.1} parent=1 // pred_fallthru
      _
    %64 = vsyncpa [#allocation3], 1
    %65 = vsyncpa [#allocation4], 1

</llo_original>
